<compile_context>
chip_gen: v5e
topology: v5e:2x2
jax: 0.10.0
libtpu: 0.0.40
codegen_flags: <defaults>
</compile_context>

<pallas_src>
import math

import jax
import jax.numpy as jnp
from jax.experimental import pallas as pl
from jax.experimental.pallas import tpu as pltpu


def _round_up(a, m):
    return ((a + m - 1) // m) * m


def _cdiv(a, m):
    return (a + m - 1) // m


def _vmem_capacity_bytes():
    """Physical VMEM of the attached TPU; conservative 64 MiB (v7x) fallback."""
    try:
        info = pltpu.get_tpu_info()
        cap = getattr(info, "vmem_capacity_bytes", None)
        if cap:
            return int(cap)
    except Exception:
        pass
    return 64 * 1024 * 1024


def trainer_forward_kernel(pf_ref, pi_ref, x_ref, w_ref, y_ref,
                           logits_ref, part_ref):
    # pf_ref (SMEM f32[3]): [bias, pos_weight, logit_threshold]
    # pi_ref (SMEM i32[1]): [n_valid]  (true batch size)
    bias = pf_ref[0]
    pos_weight = pf_ref[1]
    logit_thresh = pf_ref[2]
    n_valid = pi_ref[0]

    i = pl.program_id(0)
    tb = y_ref.shape[1]                      # rows handled by this tile

    x = x_ref[...]                           # (tb, D)   native dtype
    w = w_ref[...]                           # (8, D)    row 0 = weight

    # ---- Linear(D, 1) on the MXU as w(8,D) @ x(tb,D)^T -> (8, tb) ----------
    # (the attention q@k^T pattern; row 0 holds all tb logits *lane-dense*)
    strip = jax.lax.dot_general(
        w, x, dimension_numbers=(((1,), (1,)), ((), ())),
        preferred_element_type=jnp.float32)  # (8, tb) f32
    z = strip[0:1, :] + bias                 # (1, tb) lane-dense logits
    logits_ref[...] = z

    y = y_ref[...]                           # (1, tb) f32 in {0, 1}

    # ---- validity mask for the (partial) last tile: exact int32 index math --
    lane = jax.lax.broadcasted_iota(jnp.int32, (1, tb), 1)
    valid_b = (lane + i * tb) < n_valid      # (1, tb) bool
    valid = valid_b.astype(jnp.float32)

    # ---- BCEWithLogitsLoss with pos_weight (numerically stable) -------------
    #   softplus(z)  = max(z, 0) + log1p(exp(-|z|));  softplus(-z) = softplus(z) - z
    l1p = jnp.log1p(jnp.exp(-jnp.abs(z)))
    sp_pos = jnp.maximum(z, 0.0) + l1p
    sp_neg = sp_pos - z
    one_m_y = 1.0 - y
    loss_el = pos_weight * y * sp_neg + one_m_y * sp_pos
    # select (not multiply) so undefined/NaN values in the OOB tail are dropped
    loss_sum = jnp.sum(jnp.where(valid_b, loss_el, 0.0))

    # ---- predictions via logit-space threshold (== sigmoid(z) > threshold) --
    pv = jnp.where(z > logit_thresh, valid, 0.0)   # pred  & valid
    npv = valid - pv                               # !pred & valid
    tn = jnp.sum(npv * one_m_y)
    fp = jnp.sum(pv * one_m_y)
    fn = jnp.sum(npv * y)
    tp = jnp.sum(pv * y)

    # pack the five per-tile partial sums into lanes 0..4 of a dense (8,128) block
    lane8 = jax.lax.broadcasted_iota(jnp.int32, (8, 128), 1)
    part_ref[...] = (jnp.where(lane8 == 0, loss_sum, 0.0)
                     + jnp.where(lane8 == 1, tn, 0.0)
                     + jnp.where(lane8 == 2, fp, 0.0)
                     + jnp.where(lane8 == 3, fn, 0.0)
                     + jnp.where(lane8 == 4, tp, 0.0))


def trainer_forward(x, weight, bias, label, pos_weight, threshold):
    """Returns (loss, accuracy, cm, logits) matching Trainer.forward semantics."""
    assert 0.0 < float(threshold) < 1.0, "threshold must be in (0, 1)"
    B, D = x.shape
    dtype = x.dtype                           # keep native dtype (bf16 OK)
    esize = jnp.dtype(dtype).itemsize

    # ---- tile-size heuristic from a VMEM byte budget ------------------------
    # per-row VMEM: 2x double-buffered x row + (1,tb) f32 y/logits tiles
    # (8-sublane padded, double buffered) + the (8,tb) f32 strip + headroom for
    # lane-dense f32 epilogue temporaries.
    cap = _vmem_capacity_bytes()
    per_row = 2 * D * esize + 448
    tb = (int(cap * 0.40) // per_row) // 128 * 128
    tb = min(tb, 128 * 1024)
    b_ceil = _round_up(B, 128)
    if b_ceil > 128:
        # keep at least 2 tiles so a "parallel" grid feeds both v7x TensorCores
        tb = min(tb, _round_up(_cdiv(b_ceil, 2), 128))
    tb = max(128, min(tb, b_ceil))
    nt = _cdiv(B, tb)
    b_pad = nt * tb                           # x itself is NOT padded/copied

    w_rows = jnp.zeros((8, D), dtype=dtype).at[0, :].set(
        weight.reshape(D).astype(dtype))
    y = jnp.zeros((1, b_pad), jnp.float32).at[0, :B].set(
        label.reshape(B).astype(jnp.float32))

    # sigmoid(z) > t  <=>  z > log(t / (1 - t)) for t in (0, 1)
    logit_thresh = math.log(float(threshold) / (1.0 - float(threshold)))
    params_f = jnp.array([bias, pos_weight, logit_thresh], dtype=jnp.float32)
    params_i = jnp.array([B], dtype=jnp.int32)

    out_shapes = (
        jax.ShapeDtypeStruct((1, b_pad), jnp.float32),     # logits (lane-dense)
        jax.ShapeDtypeStruct((nt * 8, 128), jnp.float32),  # per-tile partials
    )
    cost = pl.CostEstimate(
        flops=2 * 8 * b_pad * D,                           # actual MXU MACs
        transcendentals=2 * b_pad,
        bytes_accessed=(b_pad * D * esize + 8 * D * esize
                        + 2 * b_pad * 4 + nt * 8 * 128 * 4),
    )

    logits_row, partials = pl.pallas_call(
        trainer_forward_kernel,
        out_shape=out_shapes,
        grid=(nt,),
        in_specs=[
            pl.BlockSpec(memory_space=pltpu.MemorySpace.SMEM),   # f32 params
            pl.BlockSpec(memory_space=pltpu.MemorySpace.SMEM),   # i32 params
            pl.BlockSpec((tb, D), lambda i: (i, 0)),             # x tile
            pl.BlockSpec((8, D), lambda i: (0, 0)),              # weight (resident)
            pl.BlockSpec((1, tb), lambda i: (0, i)),             # labels strip
        ],
        out_specs=(
            pl.BlockSpec((1, tb), lambda i: (0, i)),             # logits strip
            pl.BlockSpec((8, 128), lambda i: (i, 0)),            # partials
        ),
        compiler_params=pltpu.CompilerParams(
            dimension_semantics=("parallel",),
            vmem_limit_bytes=int(cap * 0.75),
        ),
        cost_estimate=cost,
    )(params_f, params_i, x, w_rows, y)

    # tiny cross-tile reduction in the wrapper (keeps the grid axis 'parallel')
    tile_part = partials.reshape(nt, 8, 128)[:, 0, :]            # (nt, 128)
    loss = jnp.sum(tile_part[:, 0]) / B
    # per-tile counts are exact in f32 (<= tb < 2^24); finalize as int32
    counts = jnp.sum(jnp.round(tile_part[:, 1:5]).astype(jnp.int32), axis=0)
    tn, fp, fn, tp = counts[0], counts[1], counts[2], counts[3]
    acc = (tn + tp).astype(jnp.float32) / B
    cm = counts.reshape(2, 2)                                    # [[TN,FP],[FN,TP]]
    logits = logits_row[0, :B].reshape(B, 1)
    return loss, acc, cm, logits


def _reference_forward(x, weight, bias, label, pos_weight, threshold):
    logits = x.astype(jnp.float32) @ weight.reshape(-1, 1).astype(jnp.float32) + bias
    y = label.reshape(-1, 1).astype(jnp.float32)
    sp_pos = jax.nn.softplus(logits)
    sp_neg = jax.nn.softplus(-logits)
    loss = jnp.mean(pos_weight * y * sp_neg + (1.0 - y) * sp_pos)
    pred = (jax.nn.sigmoid(logits) > threshold).astype(jnp.float32)
    acc = jnp.mean((pred == y).astype(jnp.float32))
    tn = jnp.sum((1 - pred) * (1 - y)); fp = jnp.sum(pred * (1 - y))
    fn = jnp.sum((1 - pred) * y);       tp = jnp.sum(pred * y)
    cm = jnp.array([[tn, fp], [fn, tp]], dtype=jnp.int32)
    return loss, acc, cm, logits


def _run_case(key, B, D, pos_weight, threshold):
    k_x, k_w, k_b, k_l = jax.random.split(key, 4)
    x = jax.random.normal(k_x, (B, D), dtype=jnp.float32)

    # Deterministic kaiming_normal-style init (a=0.2, leaky_relu), per weight_init
    gain = (2.0 / (1.0 + 0.2 ** 2)) ** 0.5
    std = gain / (D ** 0.5)
    weight = std * jax.random.normal(k_w, (D,), dtype=jnp.float32)
    bound = 1.0 / (D ** 0.5)
    bias = jax.random.uniform(k_b, (), minval=-bound, maxval=bound,
                              dtype=jnp.float32)
    label = jax.random.bernoulli(k_l, 0.4, (B,)).astype(jnp.float32)

    loss, acc, cm, logits = trainer_forward(x, weight, bias, label,
                                            pos_weight, threshold)
    jax.block_until_ready((loss, acc, cm, logits))

    r_loss, r_acc, r_cm, r_logits = _reference_forward(
        x, weight, bias, label, pos_weight, threshold)
    assert jnp.allclose(loss, r_loss, atol=1e-4), (loss, r_loss)
    assert jnp.allclose(acc, r_acc, atol=1e-6), (acc, r_acc)
    assert jnp.array_equal(cm, r_cm), (cm, r_cm)
    assert jnp.allclose(logits, r_logits, atol=1e-4), (logits, r_logits)


if __name__ == "__main__":
    key = jax.random.PRNGKey(0)
    k1, k2 = jax.random.split(key, 2)

    # Case 1: tiny batch (single, partially-valid tile).
    # args.numberOfNonSpammer / args.numberOfSpammer = 3.0, args.threshold = 0.5
    _run_case(k1, B=20, D=32, pos_weight=3.0, threshold=0.5)

    # Case 2: multi-tile grid with a masked partial remainder block.
    _run_case(k2, B=300, D=64, pos_weight=1.5, threshold=0.35)

    print("KERNEL_OK")
</pallas_src>

<mosaic_0001>
module attributes {stable_mosaic.version = 11 : i64} {
  func.func @trainer_forward_kernel(%arg0: i32, %arg1: memref<3xf32, #tpu.memory_space<smem>>, %arg2: memref<1xi32, #tpu.memory_space<smem>>, %arg3: memref<128x32xf32, #tpu.memory_space<vmem>>, %arg4: memref<8x32xf32, #tpu.memory_space<vmem>>, %arg5: memref<1x128xf32, #tpu.memory_space<vmem>>, %arg6: memref<1x128xf32, #tpu.memory_space<vmem>>, %arg7: memref<8x128xf32, #tpu.memory_space<vmem>>) attributes {dimension_semantics = [#tpu.dimension_semantics<parallel>], iteration_bounds = array<i64: 1>, scalar_prefetch = 0 : i64, scratch_operands = 0 : i64, tpu.core_type = #tpu.core_type<tc>, window_params = [{transform_indices = @transform_0, window_bounds = array<i64: 3>}, {transform_indices = @transform_1, window_bounds = array<i64: 1>}, {transform_indices = @transform_2, window_bounds = array<i64: 128, 32>}, {pipeline_mode = #tpu.pipeline_mode<synchronous>, transform_indices = @transform_3, window_bounds = array<i64: 8, 32>}, {transform_indices = @transform_4, window_bounds = array<i64: 1, 128>}, {transform_indices = @transform_5, window_bounds = array<i64: 1, 128>}, {transform_indices = @transform_6, window_bounds = array<i64: 8, 128>}]} {
    %c0 = arith.constant 0 : index
    %0 = memref.load %arg1[%c0] : memref<3xf32, #tpu.memory_space<smem>>
    %c1 = arith.constant 1 : index
    %1 = memref.load %arg1[%c1] : memref<3xf32, #tpu.memory_space<smem>>
    %c2 = arith.constant 2 : index
    %2 = memref.load %arg1[%c2] : memref<3xf32, #tpu.memory_space<smem>>
    %c0_0 = arith.constant 0 : index
    %3 = memref.load %arg2[%c0_0] : memref<1xi32, #tpu.memory_space<smem>>
    %c0_1 = arith.constant 0 : index
    %c0_2 = arith.constant 0 : index
    %4 = vector.load %arg3[%c0_1, %c0_2] : memref<128x32xf32, #tpu.memory_space<vmem>>, vector<128x32xf32>
    %c0_3 = arith.constant 0 : index
    %c0_4 = arith.constant 0 : index
    %5 = vector.load %arg4[%c0_3, %c0_4] : memref<8x32xf32, #tpu.memory_space<vmem>>, vector<8x32xf32>
    %cst = arith.constant dense<0.000000e+00> : vector<8x128xf32>
    %6 = tpu.matmul %5, %4, %cst {dimension_numbers = #tpu.dot_dimension_numbers<[1], [1], [0], [0], [0, 0, 1, 0], [], []>} : vector<8x32xf32>, vector<128x32xf32>, vector<8x128xf32> -> vector<8x128xf32>
    %7 = vector.extract_strided_slice %6 {offsets = [0, 0], sizes = [1, 128], strides = [1, 1]} : vector<8x128xf32> to vector<1x128xf32>
    %8 = vector.broadcast %0 : f32 to vector<1x128xf32>
    %9 = arith.addf %7, %8 : vector<1x128xf32>
    %c0_5 = arith.constant 0 : index
    %c0_6 = arith.constant 0 : index
    %10 = vector.load %arg6[%c0_5, %c0_6] : memref<1x128xf32, #tpu.memory_space<vmem>>, vector<1x128xf32>
    tpu.vector_store %arg6[%c0_5, %c0_6], %9 {strides = array<i32>} : memref<1x128xf32, #tpu.memory_space<vmem>>, vector<1x128xf32>,
    %c0_7 = arith.constant 0 : index
    %c0_8 = arith.constant 0 : index
    %11 = vector.load %arg5[%c0_7, %c0_8] : memref<1x128xf32, #tpu.memory_space<vmem>>, vector<1x128xf32>
    %12 = tpu.iota {dimensions = array<i32: 1>} : vector<1x128xi32>
    %c128_i32 = arith.constant 128 : i32
    %13 = arith.muli %arg0, %c128_i32 : i32
    %14 = vector.broadcast %13 : i32 to vector<1x128xi32>
    %15 = arith.addi %12, %14 : vector<1x128xi32>
    %16 = vector.broadcast %3 : i32 to vector<1x128xi32>
    %17 = arith.cmpi slt, %15, %16 : vector<1x128xi32>
    %18 = arith.extui %17 : vector<1x128xi1> to vector<1x128xi32>
    %19 = arith.sitofp %18 : vector<1x128xi32> to vector<1x128xf32>
    %20 = math.absf %9 : vector<1x128xf32>
    %cst_9 = arith.constant 0.000000e+00 : f32
    %21 = vector.broadcast %cst_9 : f32 to vector<1x128xf32>
    %22 = arith.subf %21, %20 : vector<1x128xf32>
    %23 = math.exp %22 : vector<1x128xf32>
    %24 = math.log1p %23 : vector<1x128xf32>
    %cst_10 = arith.constant 0.000000e+00 : f32
    %25 = vector.broadcast %cst_10 : f32 to vector<1x128xf32>
    %26 = arith.maximumf %9, %25 : vector<1x128xf32>
    %27 = arith.addf %26, %24 : vector<1x128xf32>
    %28 = arith.subf %27, %9 : vector<1x128xf32>
    %cst_11 = arith.constant 1.000000e+00 : f32
    %29 = vector.broadcast %cst_11 : f32 to vector<1x128xf32>
    %30 = arith.subf %29, %11 : vector<1x128xf32>
    %31 = vector.broadcast %1 : f32 to vector<1x128xf32>
    %32 = arith.mulf %31, %11 : vector<1x128xf32>
    %33 = arith.mulf %32, %28 : vector<1x128xf32>
    %34 = arith.mulf %30, %27 : vector<1x128xf32>
    %35 = arith.addf %33, %34 : vector<1x128xf32>
    %cst_12 = arith.constant 0.000000e+00 : f32
    %36 = vector.broadcast %cst_12 : f32 to vector<1x128xf32>
    %37 = arith.select %17, %35, %36 : vector<1x128xi1>, vector<1x128xf32>
    %38 = vector.shape_cast %37 : vector<1x128xf32> to vector<1x1x128xf32>
    %cst_13 = arith.constant dense<0.000000e+00> : vector<1xf32>
    %39 = vector.multi_reduction <add>, %38, %cst_13 [1, 2] : vector<1x1x128xf32> to vector<1xf32>
    %40 = vector.shape_cast %39 : vector<1xf32> to vector<1x1x1xf32>
    %41 = vector.extract %40[0, 0, 0] : f32 from vector<1x1x1xf32>
    %42 = vector.broadcast %2 : f32 to vector<1x128xf32>
    %43 = arith.cmpf ogt, %9, %42 : vector<1x128xf32>
    %cst_14 = arith.constant 0.000000e+00 : f32
    %44 = vector.broadcast %cst_14 : f32 to vector<1x128xf32>
    %45 = arith.select %43, %19, %44 : vector<1x128xi1>, vector<1x128xf32>
    %46 = arith.subf %19, %45 : vector<1x128xf32>
    %47 = arith.mulf %46, %30 : vector<1x128xf32>
    %48 = vector.shape_cast %47 : vector<1x128xf32> to vector<1x1x128xf32>
    %cst_15 = arith.constant dense<0.000000e+00> : vector<1xf32>
    %49 = vector.multi_reduction <add>, %48, %cst_15 [1, 2] : vector<1x1x128xf32> to vector<1xf32>
    %50 = vector.shape_cast %49 : vector<1xf32> to vector<1x1x1xf32>
    %51 = vector.extract %50[0, 0, 0] : f32 from vector<1x1x1xf32>
    %52 = arith.mulf %45, %30 : vector<1x128xf32>
    %53 = vector.shape_cast %52 : vector<1x128xf32> to vector<1x1x128xf32>
    %cst_16 = arith.constant dense<0.000000e+00> : vector<1xf32>
    %54 = vector.multi_reduction <add>, %53, %cst_16 [1, 2] : vector<1x1x128xf32> to vector<1xf32>
    %55 = vector.shape_cast %54 : vector<1xf32> to vector<1x1x1xf32>
    %56 = vector.extract %55[0, 0, 0] : f32 from vector<1x1x1xf32>
    %57 = arith.mulf %46, %11 : vector<1x128xf32>
    %58 = vector.shape_cast %57 : vector<1x128xf32> to vector<1x1x128xf32>
    %cst_17 = arith.constant dense<0.000000e+00> : vector<1xf32>
    %59 = vector.multi_reduction <add>, %58, %cst_17 [1, 2] : vector<1x1x128xf32> to vector<1xf32>
    %60 = vector.shape_cast %59 : vector<1xf32> to vector<1x1x1xf32>
    %61 = vector.extract %60[0, 0, 0] : f32 from vector<1x1x1xf32>
    %62 = arith.mulf %45, %11 : vector<1x128xf32>
    %63 = vector.shape_cast %62 : vector<1x128xf32> to vector<1x1x128xf32>
    %cst_18 = arith.constant dense<0.000000e+00> : vector<1xf32>
    %64 = vector.multi_reduction <add>, %63, %cst_18 [1, 2] : vector<1x1x128xf32> to vector<1xf32>
    %65 = vector.shape_cast %64 : vector<1xf32> to vector<1x1x1xf32>
    %66 = vector.extract %65[0, 0, 0] : f32 from vector<1x1x1xf32>
    %67 = tpu.iota {dimensions = array<i32: 1>} : vector<8x128xi32>
    %c0_i32 = arith.constant 0 : i32
    %68 = vector.broadcast %c0_i32 : i32 to vector<8x128xi32>
    %69 = arith.cmpi eq, %67, %68 : vector<8x128xi32>
    %cst_19 = arith.constant 0.000000e+00 : f32
    %70 = vector.broadcast %41 : f32 to vector<8x128xf32>
    %71 = vector.broadcast %cst_19 : f32 to vector<8x128xf32>
    %72 = arith.select %69, %70, %71 : vector<8x128xi1>, vector<8x128xf32>
    %c1_i32 = arith.constant 1 : i32
    %73 = vector.broadcast %c1_i32 : i32 to vector<8x128xi32>
    %74 = arith.cmpi eq, %67, %73 : vector<8x128xi32>
    %cst_20 = arith.constant 0.000000e+00 : f32
    %75 = vector.broadcast %51 : f32 to vector<8x128xf32>
    %76 = vector.broadcast %cst_20 : f32 to vector<8x128xf32>
    %77 = arith.select %74, %75, %76 : vector<8x128xi1>, vector<8x128xf32>
    %78 = arith.addf %72, %77 : vector<8x128xf32>
    %c2_i32 = arith.constant 2 : i32
    %79 = vector.broadcast %c2_i32 : i32 to vector<8x128xi32>
    %80 = arith.cmpi eq, %67, %79 : vector<8x128xi32>
    %cst_21 = arith.constant 0.000000e+00 : f32
    %81 = vector.broadcast %56 : f32 to vector<8x128xf32>
    %82 = vector.broadcast %cst_21 : f32 to vector<8x128xf32>
    %83 = arith.select %80, %81, %82 : vector<8x128xi1>, vector<8x128xf32>
    %84 = arith.addf %78, %83 : vector<8x128xf32>
    %c3_i32 = arith.constant 3 : i32
    %85 = vector.broadcast %c3_i32 : i32 to vector<8x128xi32>
    %86 = arith.cmpi eq, %67, %85 : vector<8x128xi32>
    %cst_22 = arith.constant 0.000000e+00 : f32
    %87 = vector.broadcast %61 : f32 to vector<8x128xf32>
    %88 = vector.broadcast %cst_22 : f32 to vector<8x128xf32>
    %89 = arith.select %86, %87, %88 : vector<8x128xi1>, vector<8x128xf32>
    %90 = arith.addf %84, %89 : vector<8x128xf32>
    %c4_i32 = arith.constant 4 : i32
    %91 = vector.broadcast %c4_i32 : i32 to vector<8x128xi32>
    %92 = arith.cmpi eq, %67, %91 : vector<8x128xi32>
    %cst_23 = arith.constant 0.000000e+00 : f32
    %93 = vector.broadcast %66 : f32 to vector<8x128xf32>
    %94 = vector.broadcast %cst_23 : f32 to vector<8x128xf32>
    %95 = arith.select %92, %93, %94 : vector<8x128xi1>, vector<8x128xf32>
    %96 = arith.addf %90, %95 : vector<8x128xf32>
    %c0_24 = arith.constant 0 : index
    %c0_25 = arith.constant 0 : index
    %97 = vector.load %arg7[%c0_24, %c0_25] : memref<8x128xf32, #tpu.memory_space<vmem>>, vector<8x128xf32>
    tpu.vector_store %arg7[%c0_24, %c0_25], %96 {strides = array<i32>} : memref<8x128xf32, #tpu.memory_space<vmem>>, vector<8x128xf32>,
    return
  }
  func.func @transform_0(%arg0: i32) -> i32 {
    %c0_i32 = arith.constant 0 : i32
    %c0_i32_0 = arith.constant 0 : i32
    return %c0_i32 : i32
  }
  func.func @transform_1(%arg0: i32) -> i32 {
    %c0_i32 = arith.constant 0 : i32
    %c0_i32_0 = arith.constant 0 : i32
    return %c0_i32 : i32
  }
  func.func @transform_2(%arg0: i32) -> (i32, i32) {
    %c0_i32 = arith.constant 0 : i32
    %c0_i32_0 = arith.constant 0 : i32
    return %arg0, %c0_i32 : i32, i32
  }
  func.func @transform_3(%arg0: i32) -> (i32, i32) {
    %c0_i32 = arith.constant 0 : i32
    %c0_i32_0 = arith.constant 0 : i32
    %c0_i32_1 = arith.constant 0 : i32
    return %c0_i32, %c0_i32_0 : i32, i32
  }
  func.func @transform_4(%arg0: i32) -> (i32, i32) {
    %c0_i32 = arith.constant 0 : i32
    %c0_i32_0 = arith.constant 0 : i32
    return %c0_i32, %arg0 : i32, i32
  }
  func.func @transform_5(%arg0: i32) -> (i32, i32) {
    %c0_i32 = arith.constant 0 : i32
    %c0_i32_0 = arith.constant 0 : i32
    return %c0_i32, %arg0 : i32, i32
  }
  func.func @transform_6(%arg0: i32) -> (i32, i32) {
    %c0_i32 = arith.constant 0 : i32
    %c0_i32_0 = arith.constant 0 : i32
    return %arg0, %c0_i32 : i32, i32
  }
}

</mosaic_0001>

<llo_original>
// kernel: tpu_custom_call.1
$region0: #{tpu_custom_call.1}
  #allocation0 [shape = 'u32[]', space=smem, size = 0x4, offset = 0x4, fixed_abs, tag = 'smem constant byte address 0x4 - core index']
  #allocation1 [shape = 'u32[72,128]{1,0:T(1,128)}', space=vmem, size = 0x9000, scoped, tag = 'internal scratch']
  #allocation2 [shape = 's32[1]{0:T(128)S(6)}', space=smem, size = 0x200, scoped, tag = 'scoped memory for tpu_custom_call.1']
  %s0 = inlined_call_operand.vmem [shape: f32[3], index: 0, kind: input, shape index: {}]
  %s1 = inlined_call_operand.<no memory space> [shape: s32[1], index: 1, kind: input, shape index: {}]
  %s2 = inlined_call_operand.hbm [shape: f32[20,32], index: 2, kind: input, shape index: {}]
  %s3 = inlined_call_operand.hbm [shape: f32[8,32], index: 3, kind: input, shape index: {}]
  %s4 = inlined_call_operand.vmem [shape: f32[1,128], index: 4, kind: input, shape index: {}]
  %s5 = inlined_call_operand.hbm [shape: f32[1,128], index: 5, kind: output, shape index: {0}]
  %s6 = inlined_call_operand.hbm [shape: f32[8,128], index: 6, kind: output, shape index: {1}]
  %7 = xla_tuple %s5, %s6
  %s8 = sld [smem:[#allocation0]]
  $region50: #{tpu_custom_call.1} parent=0
    _
  %s10 = ssub.s32 1, %s8
  %s11 = scalar_select 0, %s10, %s8
  %12 = sst [smem:[#allocation2]] %s1
  $region1: #{tpu_custom_call.1} parent=0
    #allocation3 [shape = 'u8[512]{0}', space=smem, size = 0x200, scoped, tag = 'input window, operand 0, single buffered']
    #allocation4 [shape = 's32[1]{0}', space=sflag, size = 0x4, scoped, tag = 'scoped memory for tpu_custom_call.1']
    #allocation5 [shape = 's32[1]{0}', space=sflag, size = 0x4, scoped, tag = 'scoped memory for tpu_custom_call.1']
    #allocation6 [shape = 's32[1]{0}', space=sflag, size = 0x4, scoped, tag = 'scoped memory for tpu_custom_call.1']
    #allocation7 [shape = 'u8[65536]{0}', space=vmem, size = 0x10000, scoped, tag = 'input window, operand 2, single buffered']
    #allocation8 [shape = 'u8[4096]{0}', space=vmem, size = 0x1000, scoped, tag = 'input window, operand 3, single buffered']
    #allocation9 [shape = 's32[1]{0}', space=sflag, size = 0x4, scoped, tag = 'scoped memory for tpu_custom_call.1']
    #allocation10 [shape = 'u8[512]{0}', space=vmem, size = 0x400, scoped, tag = 'output window, operand 0, single buffered']
    #allocation11 [shape = 'u8[4096]{0}', space=vmem, size = 0x1000, scoped, tag = 'output window, operand 1, single buffered']
    #allocation12 [shape = 's32[1]{0}', space=sflag, size = 0x4, scoped, tag = 'scoped memory for tpu_custom_call.1']
    %13 = vsyncpa [#allocation6], 0
    %14 = vsyncpa [#allocation4], 0
    %15 = vsyncpa [#allocation9], 0
    %16 = vsyncpa [#allocation5], 0
    %17 = vsyncpa [#allocation12], 0
    // Predicated region
    $region2: #{tpu_custom_call.1} parent=1 // pred_check
      _
    $region3: #{tpu_custom_call.1} parent=1 // pred_check_branch
      %19 = sbr.rel (0) target = $region5
    $region4: #{tpu_custom_call.1} parent=1 // pred_region
      %21 = vsyncadd [#allocation6], 0
      %s23 = sshll.u32 %s0, 4
      %s24 = int_to_ptr.vmem [resolvable:$true] %s23
      %26 = dma.vmem_to_smem %s24, 16, [#allocation3], [#allocation6]
    $region5: #{tpu_custom_call.1} parent=1 // pred_fallthru
      _
    // Predicated region
    $region6: #{tpu_custom_call.1} parent=1 // pred_check
      _
    $region7: #{tpu_custom_call.1} parent=1 // pred_check_branch
      %28 = sbr.rel (0) target = $region9
    $region8: #{tpu_custom_call.1} parent=1 // pred_region
      _
    $region9: #{tpu_custom_call.1} parent=1 // pred_fallthru
      _
    // Predicated region
    $region10: #{tpu_custom_call.1} parent=1 // pred_check
      _
    $region11: #{tpu_custom_call.1} parent=1 // pred_check_branch
      %30 = sbr.rel (0) target = $region13
    $region12: #{tpu_custom_call.1} parent=1 // pred_region
      %32 = vsyncadd [#allocation4], 1664
      %s33 = sshll.u32 %s2, 4
      %s34 = int_to_ptr.hbm [resolvable:$true] %s33
      %s35 = sshll.u32 [#allocation7], 4
      %s36 = int_to_ptr.vmem [resolvable:$true] %s35
      %41 = dma.hbm_to_vmem [thread:$0]  %s34, 384, %s36, [#allocation4], 128, 128, 8
    $region13: #{tpu_custom_call.1} parent=1 // pred_fallthru
      _
    // Predicated region
    $region14: #{tpu_custom_call.1} parent=1 // pred_check
      _
    $region15: #{tpu_custom_call.1} parent=1 // pred_check_branch
      %43 = sbr.rel (0) target = $region17
    $region16: #{tpu_custom_call.1} parent=1 // pred_region
      %45 = vsyncadd [#allocation9], 0
      %s47 = sshll.u32 %s3, 4
      %s48 = int_to_ptr.hbm [resolvable:$true] %s47
      %s49 = sshll.u32 [#allocation8], 4
      %s50 = int_to_ptr.vmem [resolvable:$true] %s49
      %52 = dma.hbm_to_vmem [thread:$0]  %s48, 128, %s50, [#allocation9]
    $region17: #{tpu_custom_call.1} parent=1 // pred_fallthru
      _
    // Predicated region
    $region18: #{tpu_custom_call.1} parent=1 // pred_check
      _
    $region19: #{tpu_custom_call.1} parent=1 // pred_check_branch
      %54 = sbr.rel (0) target = $region21
    $region20: #{tpu_custom_call.1} parent=1 // pred_region
      _
    $region21: #{tpu_custom_call.1} parent=1 // pred_fallthru
      _
    // Predicated region
    $region22: #{tpu_custom_call.1} parent=1 // pred_check
      _
    $region23: #{tpu_custom_call.1} parent=1 // pred_check_branch
      %56 = sbr.rel (0) target = $region25
    $region24: #{tpu_custom_call.1} parent=1 // pred_region
      %58 = dma.done [#allocation6], 16
    $region25: #{tpu_custom_call.1} parent=1 // pred_fallthru
      _
    // Predicated region
    $region26: #{tpu_custom_call.1} parent=1 // pred_check
      _
    $region27: #{tpu_custom_call.1} parent=1 // pred_check_branch
      %60 = sbr.rel (0) target = $region29
    $region28: #{tpu_custom_call.1} parent=1 // pred_region
      %62 = dma.done [#allocation4], 2048
    $region29: #{tpu_custom_call.1} parent=1 // pred_fallthru
      _
    // Predicated region
    $region30: #{tpu_custom_call.1} parent=1 // pred_check
      _
    $region31: #{tpu_custom_call.1} parent=1 // pred_check_branch
      %64 = sbr.rel (0) target = $region33
    $region32: #{tpu_custom_call.1} parent=1 // pred_region
      %66 = dma.done [#allocation9], 128
    $region33: #{tpu_custom_call.1} parent=1 // pred_fallthru
      _
    %67 = sfence
    %s68 = sld [smem:[#allocation3]]
    %s69 = sld [smem:[#allocation3 + $0x1]]
    %s70 = sld [smem:[#allocation3 + $0x2]]
    %s71 = sld [smem:[#allocation2]]
    %v72 = vld [vmem:[#allocation7] sm:$0xff]
    %v73 = vld [vmem:[#allocation7 + $0x8] sm:$0xff]
    %v74 = vld [vmem:[#allocation7 + $0x10] sm:$0xff]
    %v75 = vld [vmem:[#allocation7 + $0x18] sm:$0xff]
    %v76 = vld [vmem:[#allocation7 + $0x20] sm:$0xff]
    %v77 = vld [vmem:[#allocation7 + $0x28] sm:$0xff]
    %v78 = vld [vmem:[#allocation7 + $0x30] sm:$0xff]
    %v79 = vld [vmem:[#allocation7 + $0x38] sm:$0xff]
    %v80 = vld [vmem:[#allocation7 + $0x40] sm:$0xff]
    %v81 = vld [vmem:[#allocation7 + $0x48] sm:$0xff]
    %v82 = vld [vmem:[#allocation7 + $0x50] sm:$0xff]
    %v83 = vld [vmem:[#allocation7 + $0x58] sm:$0xff]
    %v84 = vld [vmem:[#allocation7 + $0x60] sm:$0xff]
    %v85 = vld [vmem:[#allocation7 + $0x68] sm:$0xff]
    %v86 = vld [vmem:[#allocation7 + $0x70] sm:$0xff]
    %v87 = vld [vmem:[#allocation7 + $0x78] sm:$0xff]
    %v88 = vld [vmem:[#allocation8] sm:$0xff]
    %vm89 = vcmask 261120
    %v91 = vsel %vm89, %v88, 0
    %v94 = vsel %vm89, %v72, 0
    %v97 = vsel %vm89, %v73, 0
    %v100 = vsel %vm89, %v74, 0
    %v103 = vsel %vm89, %v75, 0
    %v106 = vsel %vm89, %v76, 0
    %v109 = vsel %vm89, %v77, 0
    %v112 = vsel %vm89, %v78, 0
    %v115 = vsel %vm89, %v79, 0
    %v118 = vsel %vm89, %v80, 0
    %v121 = vsel %vm89, %v81, 0
    %v124 = vsel %vm89, %v82, 0
    %v127 = vsel %vm89, %v83, 0
    %v130 = vsel %vm89, %v84, 0
    %v133 = vsel %vm89, %v85, 0
    %v136 = vsel %vm89, %v86, 0
    %v139 = vsel %vm89, %v87, 0
    %141 = vmatpush.xpose.msra.mxu0 %v139
    %142 = vmatpush.xpose.msra.mxu0 %v136
    %143 = vmatpush.xpose.msra.mxu0 %v133
    %144 = vmatpush.xpose.msra.mxu0 %v130
    %145 = vmatpush.xpose.msra.mxu0 %v127
    %146 = vmatpush.xpose.msra.mxu0 %v124
    %147 = vmatpush.xpose.msra.mxu0 %v121
    %148 = vmatpush.xpose.msra.mxu0 %v118
    %149 = vmatpush.xpose.msra.mxu0 %v115
    %150 = vmatpush.xpose.msra.mxu0 %v112
    %151 = vmatpush.xpose.msra.mxu0 %v109
    %152 = vmatpush.xpose.msra.mxu0 %v106
    %153 = vmatpush.xpose.msra.mxu0 %v103
    %154 = vmatpush.xpose.msra.mxu0 %v100
    %155 = vmatpush.xpose.msra.mxu0 %v97
    %156 = vmatpush.xpose.msra.mxu0 %v94
    %157 = vmatmul.f32.gmra.mxu0 %v91
    %v158 = vpop.f32.mrf.mxu0
    %v159 = vadd.f32 0.0, %v158
    %160 = vdwg.mxu0
    %v161 = vstv %s68
    %v162 = vadd.f32 %v159, %v161
    %163 = vst [vmem:[#allocation10] sm:$0x1] %v162
    %v164 = vld [vmem:[%s4] sm:$0x1]
    %v165 = vlaneseq
    %v166 = vand.u32 %v165, 127
    %s167 = smul.u32 0, 128
    %v168 = vstv %s167
    %v169 = vadd.s32 %v166, %v168
    %v170 = vstv %s71
    %vm171 = vcmp.lt.s32.totalorder %v169, %v170
    %v172 = vsel %vm171, 1, 0
    %v173 = vcvt.s32.f32 %v172
    %v174 = vand.u32 2147483647, %v162
    %v175 = vsub.f32 0.0, %v174
    %v176 = vmul.f32 %v175, 1.442695
    %v177 = vpow.pop %v176
    %v178 = vadd.f32 %v177, 1.0
    %v179 = vlog2.pop %v178
    %v180 = vmul.f32 %v179, 0.6931472
    %v181 = vmul.f32 -0.5, %v177
    %v182 = vadd.f32 %v181, 1.0
    %v183 = vmul.f32 %v182, %v177
    %v184 = vand.u32 2147483647, %v177
    %vm185 = vcmp.lt.f32.partialorder %v184, 0.0004427343
    %v186 = vsel %vm185, %v183, %v180
    %v187 = vmax.f32 %v162, 0.0
    %v188 = vadd.f32 %v187, %v186
    %v189 = vsub.f32 %v188, %v162
    %v190 = vsub.f32 1.0, %v164
    %v191 = vstv %s69
    %v192 = vmul.f32 %v191, %v164
    %v193 = vmul.f32 %v192, %v189
    %v194 = vmul.f32 %v190, %v188
    %v195 = vadd.f32 %v193, %v194
    %v196 = vsel %vm171, %v195, 0.0
    %vm197 = vcmask 1040384
    %v198 = vsel %vm197, %v196, 0.0
    %199 = vadd.xlane.f32.xlu0 %v198
    %v200 = vpop.xlane.xlu0 %199
    %v201 = vrot.slane %v200, 4
    %v202 = vadd.f32 %v200, %v201
    %v203 = vrot.slane %v202, 2
    %v204 = vadd.f32 %v202, %v203
    %v205 = vrot.slane %v204, 1
    %v206 = vadd.f32 %v204, %v205
    %s207 = vtos %v206
    %v208 = vstv %s70
    %vm209 = vcmp.gt.f32.partialorder %v162, %v208
    %v210 = vsel %vm209, %v173, 0.0
    %v211 = vsub.f32 %v173, %v210
    %v212 = vmul.f32 %v211, %v190
    %v213 = vsel %vm197, %v212, 0.0
    %214 = vadd.xlane.f32.xlu0 %v213
    %v215 = vpop.xlane.xlu0 %214
    %v216 = vrot.slane %v215, 4
    %v217 = vadd.f32 %v215, %v216
    %v218 = vrot.slane %v217, 2
    %v219 = vadd.f32 %v217, %v218
    %v220 = vrot.slane %v219, 1
    %v221 = vadd.f32 %v219, %v220
    %s222 = vtos %v221
    %v223 = vmul.f32 %v210, %v190
    %v224 = vsel %vm197, %v223, 0.0
    %225 = vadd.xlane.f32.xlu0 %v224
    %v226 = vpop.xlane.xlu0 %225
    %v227 = vrot.slane %v226, 4
    %v228 = vadd.f32 %v226, %v227
    %v229 = vrot.slane %v228, 2
    %v230 = vadd.f32 %v228, %v229
    %v231 = vrot.slane %v230, 1
    %v232 = vadd.f32 %v230, %v231
    %s233 = vtos %v232
    %v234 = vmul.f32 %v211, %v164
    %v235 = vsel %vm197, %v234, 0.0
    %236 = vadd.xlane.f32.xlu0 %v235
    %v237 = vpop.xlane.xlu0 %236
    %v238 = vrot.slane %v237, 4
    %v239 = vadd.f32 %v237, %v238
    %v240 = vrot.slane %v239, 2
    %v241 = vadd.f32 %v239, %v240
    %v242 = vrot.slane %v241, 1
    %v243 = vadd.f32 %v241, %v242
    %s244 = vtos %v243
    %v245 = vmul.f32 %v210, %v164
    %v246 = vsel %vm197, %v245, 0.0
    %247 = vadd.xlane.f32.xlu0 %v246
    %v248 = vpop.xlane.xlu0 %247
    %v249 = vrot.slane %v248, 4
    %v250 = vadd.f32 %v248, %v249
    %v251 = vrot.slane %v250, 2
    %v252 = vadd.f32 %v250, %v251
    %v253 = vrot.slane %v252, 1
    %v254 = vadd.f32 %v252, %v253
    %s255 = vtos %v254
    %vm256 = vcmp.eq.s32.totalorder %v166, 0
    %v257 = vstv %s207
    %v258 = vsel %vm256, %v257, 0.0
    %vm259 = vcmp.eq.s32.totalorder %v166, 1
    %v260 = vstv %s222
    %v261 = vsel %vm259, %v260, 0.0
    %v262 = vadd.f32 %v258, %v261
    %vm263 = vcmp.eq.s32.totalorder %v166, 2
    %v264 = vstv %s233
    %v265 = vsel %vm263, %v264, 0.0
    %v266 = vadd.f32 %v262, %v265
    %vm267 = vcmp.eq.s32.totalorder %v166, 3
    %v268 = vstv %s244
    %v269 = vsel %vm267, %v268, 0.0
    %v270 = vadd.f32 %v266, %v269
    %vm271 = vcmp.eq.s32.totalorder %v166, 4
    %v272 = vstv %s255
    %v273 = vsel %vm271, %v272, 0.0
    %v274 = vadd.f32 %v270, %v273
    %275 = vst [vmem:[#allocation11] sm:$0xff] %v274
    // Predicated region
    $region34: #{tpu_custom_call.1} parent=1 // pred_check
      _
    $region35: #{tpu_custom_call.1} parent=1 // pred_check_branch
      %277 = sbr.rel (0) target = $region37
    $region36: #{tpu_custom_call.1} parent=1 // pred_region
      %279 = vsyncadd [#allocation5], 0
      %s281 = sshll.u32 [#allocation10], 4
      %s282 = int_to_ptr.vmem [resolvable:$true] %s281
      %s283 = sshll.u32 %s5, 4
      %s284 = int_to_ptr.hbm [resolvable:$true] %s283
      %286 = dma.vmem_to_hbm [thread:$0]  %s282, 16, %s284, [#allocation5]
    $region37: #{tpu_custom_call.1} parent=1 // pred_fallthru
      _
    // Predicated region
    $region38: #{tpu_custom_call.1} parent=1 // pred_check
      _
    $region39: #{tpu_custom_call.1} parent=1 // pred_check_branch
      %288 = sbr.rel (0) target = $region41
    $region40: #{tpu_custom_call.1} parent=1 // pred_region
      %290 = vsyncadd [#allocation12], 0
      %s292 = sshll.u32 [#allocation11], 4
      %s293 = int_to_ptr.vmem [resolvable:$true] %s292
      %s294 = sshll.u32 %s6, 4
      %s295 = int_to_ptr.hbm [resolvable:$true] %s294
      %297 = dma.vmem_to_hbm [thread:$0]  %s293, 128, %s295, [#allocation12]
    $region41: #{tpu_custom_call.1} parent=1 // pred_fallthru
      _
    // Predicated region
    $region42: #{tpu_custom_call.1} parent=1 // pred_check
      _
    $region43: #{tpu_custom_call.1} parent=1 // pred_check_branch
      %299 = sbr.rel (0) target = $region45
    $region44: #{tpu_custom_call.1} parent=1 // pred_region
      %301 = dma.done [#allocation5], 16
    $region45: #{tpu_custom_call.1} parent=1 // pred_fallthru
      _
    // Predicated region
    $region46: #{tpu_custom_call.1} parent=1 // pred_check
      _
    $region47: #{tpu_custom_call.1} parent=1 // pred_check_branch
      %303 = sbr.rel (0) target = $region49
    $region48: #{tpu_custom_call.1} parent=1 // pred_region
      %305 = dma.done [#allocation12], 128
    $region49: #{tpu_custom_call.1} parent=1 // pred_fallthru
      _
    %306 = vsyncpa [#allocation4], 1
    %307 = vsyncpa [#allocation9], 1
    %308 = vsyncpa [#allocation5], 1
    %309 = vsyncpa [#allocation12], 1
    %310 = vsyncpa [#allocation6], 1

</llo_original>
